<compile_context>
chip_gen: v6e
topology: v6e:2x2x1
jax: 0.10.0
libtpu: 0.0.40
codegen_flags: <defaults>
</compile_context>

<pallas_src>
import math
import functools

import jax
import jax.numpy as jnp
from jax.experimental import pallas as pl
from jax.experimental.pallas import tpu as pltpu


# ----------------------------------------------------------------------------
# Positional-encoding table (constant buffer in the PyTorch module)
# ----------------------------------------------------------------------------
def make_pe_table(d_model: int, max_len: int) -> jnp.ndarray:
    """Build the (max_len, d_model) sin/cos positional encoding table (f32)."""
    position = jnp.arange(0, max_len, dtype=jnp.float32)[:, None]            # (L, 1)
    div_term = jnp.exp(
        jnp.arange(0, d_model, 2, dtype=jnp.float32) * (-math.log(10000.0) / d_model)
    )                                                                          # (D/2,)
    angles = position * div_term                                               # (L, D/2)
    pe = jnp.zeros((max_len, d_model), dtype=jnp.float32)
    pe = pe.at[:, 0::2].set(jnp.sin(angles))
    pe = pe.at[:, 1::2].set(jnp.cos(angles))
    return pe                                                                  # (L, D)


# ----------------------------------------------------------------------------
# Kernels (2D lane-dense layout: rows = seq positions, cols = B*D)
# ----------------------------------------------------------------------------
def _pe_add_kernel(x_ref, pe_ref, o_ref):
    # Eval / p == 0 path: just the add, in the input dtype.
    o_ref[...] = x_ref[...] + pe_ref[...]


def _pe_add_dropout_kernel(x_ref, pe_ref, bits_ref, o_ref, *, threshold: int, scale: float):
    # Training path: add + inverted dropout with an integer-domain keep test.
    y = x_ref[...] + pe_ref[...]
    keep = bits_ref[...] >= jnp.uint32(threshold)        # P(keep) ~= 1 - p
    o_ref[...] = jnp.where(keep, y * scale, jnp.zeros_like(y))


# ----------------------------------------------------------------------------
# Tile-size selection: ~2 MiB blocks, multiple of 8 rows (or the full extent)
# ----------------------------------------------------------------------------
def _pick_ts(S: int, row_bytes: int, target_bytes: int = 2 << 20) -> int:
    rows = max(1, target_bytes // max(1, row_bytes))
    if S <= rows:
        return S                        # whole array fits in one comfortable block
    best = None
    d = 8
    limit = min(S, rows)
    while d <= limit:
        if S % d == 0:
            best = d
        d += 8
    return best if best is not None else S   # fallback keeps correctness


# ----------------------------------------------------------------------------
# Wrapper
# ----------------------------------------------------------------------------
def positional_encoding_forward(x, pe_table, *, p=0.1, training=True, key=None, ts=None):
    """
    x:        (S, B, D) input
    pe_table: (max_len, D) positional encodings (f32, built by make_pe_table)
    p:        dropout probability
    training: apply dropout iff True and p > 0
    key:      jax PRNG key for the dropout mask (required when dropout is active)
    """
    S, B, D = x.shape
    BD = B * D

    # Lane-dense 2D views; pe pre-tiled across the batch in the wrapper.
    x2 = x.reshape(S, BD)
    pe2 = jnp.tile(pe_table[:S], (1, B)).astype(x.dtype)                      # (S, B*D)

    if ts is None:
        ts = _pick_ts(S, BD * x.dtype.itemsize)
    assert S % ts == 0, "tile rows must divide seq_len"
    grid = (S // ts,)

    blk = pl.BlockSpec((ts, BD), lambda i: (i, 0))
    cparams = pltpu.CompilerParams(dimension_semantics=("parallel",))

    use_dropout = bool(training) and float(p) > 0.0

    if not use_dropout:
        out2 = pl.pallas_call(
            _pe_add_kernel,
            out_shape=jax.ShapeDtypeStruct((S, BD), x.dtype),
            grid=grid,
            in_specs=[blk, blk],
            out_specs=blk,
            compiler_params=cparams,
        )(x2, pe2)
        return out2.reshape(S, B, D)

    if key is None:
        key = jax.random.PRNGKey(0)
    bits = jax.random.bits(key, (S, BD), dtype=jnp.uint32)

    # keep iff bits >= threshold, so P(drop) = threshold / 2^32 ~= p
    threshold = min(int(round(float(p) * (1 << 32))), (1 << 32) - 1)
    scale = 1.0 / (1.0 - float(p))

    kernel = functools.partial(_pe_add_dropout_kernel, threshold=threshold, scale=scale)
    out2 = pl.pallas_call(
        kernel,
        out_shape=jax.ShapeDtypeStruct((S, BD), x.dtype),
        grid=grid,
        in_specs=[blk, blk, blk],
        out_specs=blk,
        compiler_params=cparams,
    )(x2, pe2, bits)
    return out2.reshape(S, B, D)


# ----------------------------------------------------------------------------
# Demo / sanity check
# ----------------------------------------------------------------------------
if __name__ == "__main__":
    d_model = 32
    max_len = 64
    seq_len = 8
    batch = 2
    dropout_p = 0.1

    key = jax.random.PRNGKey(0)
    xkey, dkey = jax.random.split(key)
    x = jax.random.normal(xkey, (seq_len, batch, d_model), dtype=jnp.float32)

    pe_table = make_pe_table(d_model, max_len)

    # Training-mode forward (add PE + inverted dropout), as in module.forward
    out_train = positional_encoding_forward(
        x, pe_table, p=dropout_p, training=True, key=dkey
    )
    out_train = jax.block_until_ready(out_train)

    # Eval-mode forward (dropout is identity) -- check against pure-JAX reference
    out_eval = positional_encoding_forward(
        x, pe_table, p=dropout_p, training=False
    )
    out_eval = jax.block_until_ready(out_eval)
    ref_eval = x + pe_table[:seq_len][:, None, :]
    assert jnp.allclose(out_eval, ref_eval, atol=1e-6), "eval-mode mismatch"

    # Sanity: every training-mode element is either dropped (0) or equals
    # (x + pe) / (1 - p).
    scaled_ref = ref_eval / (1.0 - dropout_p)
    ok = jnp.logical_or(
        jnp.isclose(out_train, 0.0, atol=1e-6),
        jnp.isclose(out_train, scaled_ref, atol=1e-5),
    )
    assert bool(jnp.all(ok)), "training-mode mismatch"

    print("KERNEL_OK")
</pallas_src>

<mosaic_0001>
module attributes {stable_mosaic.version = 11 : i64} {
  func.func @_pe_add_dropout_kernel(%arg0: i32, %arg1: memref<8x64xf32, #tpu.memory_space<vmem>>, %arg2: memref<8x64xf32, #tpu.memory_space<vmem>>, %arg3: memref<8x64xi32, #tpu.memory_space<vmem>>, %arg4: memref<8x64xf32, #tpu.memory_space<vmem>>) attributes {dimension_semantics = [#tpu.dimension_semantics<parallel>], iteration_bounds = array<i64: 1>, scalar_prefetch = 0 : i64, scratch_operands = 0 : i64, tpu.core_type = #tpu.core_type<tc>, window_params = [{transform_indices = @transform_0, window_bounds = array<i64: 8, 64>}, {transform_indices = @transform_1, window_bounds = array<i64: 8, 64>}, {transform_indices = @transform_2, window_bounds = array<i64: 8, 64>}, {transform_indices = @transform_3, window_bounds = array<i64: 8, 64>}]} {
    %c0 = arith.constant 0 : index
    %c0_0 = arith.constant 0 : index
    %0 = vector.load %arg1[%c0, %c0_0] : memref<8x64xf32, #tpu.memory_space<vmem>>, vector<8x64xf32>
    %c0_1 = arith.constant 0 : index
    %c0_2 = arith.constant 0 : index
    %1 = vector.load %arg2[%c0_1, %c0_2] : memref<8x64xf32, #tpu.memory_space<vmem>>, vector<8x64xf32>
    %2 = arith.addf %0, %1 : vector<8x64xf32>
    %c0_3 = arith.constant 0 : index
    %c0_4 = arith.constant 0 : index
    %3 = vector.load %arg3[%c0_3, %c0_4] : memref<8x64xi32, #tpu.memory_space<vmem>>, vector<8x64xi32>
    %c429496730_i32 = arith.constant 429496730 : i32
    %4 = vector.broadcast %c429496730_i32 : i32 to vector<8x64xi32>
    %5 = arith.cmpi uge, %3, %4 : vector<8x64xi32>
    %cst = arith.constant 1.11111116 : f32
    %6 = vector.broadcast %cst : f32 to vector<8x64xf32>
    %7 = arith.mulf %2, %6 : vector<8x64xf32>
    %cst_5 = arith.constant 0.000000e+00 : f32
    %8 = vector.broadcast %cst_5 : f32 to vector<8x64xf32>
    %9 = arith.select %5, %7, %8 : vector<8x64xi1>, vector<8x64xf32>
    %c0_6 = arith.constant 0 : index
    %c0_7 = arith.constant 0 : index
    %10 = vector.load %arg4[%c0_6, %c0_7] : memref<8x64xf32, #tpu.memory_space<vmem>>, vector<8x64xf32>
    tpu.vector_store %arg4[%c0_6, %c0_7], %9 {strides = array<i32>} : memref<8x64xf32, #tpu.memory_space<vmem>>, vector<8x64xf32>,
    return
  }
  func.func @transform_0(%arg0: i32) -> (i32, i32) {
    %c0_i32 = arith.constant 0 : i32
    %c0_i32_0 = arith.constant 0 : i32
    return %arg0, %c0_i32 : i32, i32
  }
  func.func @transform_1(%arg0: i32) -> (i32, i32) {
    %c0_i32 = arith.constant 0 : i32
    %c0_i32_0 = arith.constant 0 : i32
    return %arg0, %c0_i32 : i32, i32
  }
  func.func @transform_2(%arg0: i32) -> (i32, i32) {
    %c0_i32 = arith.constant 0 : i32
    %c0_i32_0 = arith.constant 0 : i32
    return %arg0, %c0_i32 : i32, i32
  }
  func.func @transform_3(%arg0: i32) -> (i32, i32) {
    %c0_i32 = arith.constant 0 : i32
    %c0_i32_0 = arith.constant 0 : i32
    return %arg0, %c0_i32 : i32, i32
  }
}

</mosaic_0001>

<llo_original>
// kernel: tpu_custom_call.1
$region0: #{tpu_custom_call.1}
  #allocation0 [shape = 'u32[]', space=smem, size = 0x4, offset = 0x4, fixed_abs, tag = 'smem constant byte address 0x4 - core index']
  #allocation1 [shape = 'u32[144,128]{1,0:T(1,128)}', space=vmem, size = 0x12000, scoped, tag = 'internal scratch']
  %s0 = inlined_call_operand.hbm [shape: f32[8,64], index: 0, kind: input, shape index: {}]
  %s1 = inlined_call_operand.hbm [shape: f32[8,64], index: 1, kind: input, shape index: {}]
  %s2 = inlined_call_operand.hbm [shape: u32[8,64], index: 2, kind: input, shape index: {}]
  %s3 = inlined_call_operand.hbm [shape: f32[8,64], index: 3, kind: output, shape index: {}]
  %s4 = sld [smem:[#allocation0]]
  $region34: #{tpu_custom_call.1} parent=0
    _
  %s6 = ssub.s32 1, %s4
  %s7 = scalar_select 0, %s6, %s4
  $region1: #{tpu_custom_call.1} parent=0
    #allocation2 [shape = 'u8[4096]{0}', space=vmem, size = 0x1000, scoped, tag = 'input window, operand 0, single buffered']
    #allocation3 [shape = 's32[1]{0}', space=sflag, size = 0x4, scoped, tag = 'scoped memory for tpu_custom_call.1']
    #allocation4 [shape = 's32[1]{0}', space=sflag, size = 0x4, scoped, tag = 'scoped memory for tpu_custom_call.1']
    #allocation5 [shape = 'u8[4096]{0}', space=vmem, size = 0x1000, scoped, tag = 'input window, operand 1, single buffered']
    #allocation6 [shape = 's32[1]{0}', space=sflag, size = 0x4, scoped, tag = 'scoped memory for tpu_custom_call.1']
    #allocation7 [shape = 'u8[4096]{0}', space=vmem, size = 0x1000, scoped, tag = 'input window, operand 2, single buffered']
    #allocation8 [shape = 'u8[4096]{0}', space=vmem, size = 0x1000, scoped, tag = 'output window, operand 0, single buffered']
    %8 = vsyncpa [#allocation3], 0
    %9 = vsyncpa [#allocation6], 0
    %10 = vsyncpa [#allocation4], 0
    // Predicated region
    $region2: #{tpu_custom_call.1} parent=1 // pred_check
      _
    $region3: #{tpu_custom_call.1} parent=1 // pred_check_branch
      %12 = sbr.rel (0) target = $region5
    $region4: #{tpu_custom_call.1} parent=1 // pred_region
      %s14 = ssub.s32 128, 128
      %15 = vsyncadd [#allocation3], %s14
      %s17 = sshll.u32 [#allocation2], 4
      %s18 = int_to_ptr.vmem [resolvable:$true] %s17
      %20 = dma.hbm_to_vmem [thread:$0]  %s0, 128, %s18, [#allocation3]
    $region5: #{tpu_custom_call.1} parent=1 // pred_fallthru
      _
    // Predicated region
    $region6: #{tpu_custom_call.1} parent=1 // pred_check
      _
    $region7: #{tpu_custom_call.1} parent=1 // pred_check_branch
      %22 = sbr.rel (0) target = $region9
    $region8: #{tpu_custom_call.1} parent=1 // pred_region
      %s24 = ssub.s32 128, 128
      %25 = vsyncadd [#allocation6], %s24
      %s27 = sshll.u32 [#allocation5], 4
      %s28 = int_to_ptr.vmem [resolvable:$true] %s27
      %30 = dma.hbm_to_vmem [thread:$0]  %s1, 128, %s28, [#allocation6]
    $region9: #{tpu_custom_call.1} parent=1 // pred_fallthru
      _
    // Predicated region
    $region10: #{tpu_custom_call.1} parent=1 // pred_check
      _
    $region11: #{tpu_custom_call.1} parent=1 // pred_check_branch
      %32 = sbr.rel (0) target = $region13
    $region12: #{tpu_custom_call.1} parent=1 // pred_region
      %s34 = ssub.s32 128, 128
      %35 = vsyncadd [#allocation6], %s34
      %s37 = sshll.u32 [#allocation7], 4
      %s38 = int_to_ptr.vmem [resolvable:$true] %s37
      %40 = dma.hbm_to_vmem [thread:$0]  %s2, 128, %s38, [#allocation6]
    $region13: #{tpu_custom_call.1} parent=1 // pred_fallthru
      _
    // Predicated region
    $region14: #{tpu_custom_call.1} parent=1 // pred_check
      _
    $region15: #{tpu_custom_call.1} parent=1 // pred_check_branch
      %42 = sbr.rel (0) target = $region17
    $region16: #{tpu_custom_call.1} parent=1 // pred_region
      %43 = dma.done [#allocation3], 128
    $region17: #{tpu_custom_call.1} parent=1 // pred_fallthru
      _
    // Predicated region
    $region18: #{tpu_custom_call.1} parent=1 // pred_check
      _
    $region19: #{tpu_custom_call.1} parent=1 // pred_check_branch
      %45 = sbr.rel (0) target = $region21
    $region20: #{tpu_custom_call.1} parent=1 // pred_region
      %46 = dma.done [#allocation6], 128
    $region21: #{tpu_custom_call.1} parent=1 // pred_fallthru
      _
    // Predicated region
    $region22: #{tpu_custom_call.1} parent=1 // pred_check
      _
    $region23: #{tpu_custom_call.1} parent=1 // pred_check_branch
      %48 = sbr.rel (0) target = $region25
    $region24: #{tpu_custom_call.1} parent=1 // pred_region
      %49 = dma.done [#allocation6], 128
    $region25: #{tpu_custom_call.1} parent=1 // pred_fallthru
      _
    %v50 = vld [vmem:[#allocation2] sm:$0xff]
    %v51 = vld [vmem:[#allocation5] sm:$0xff]
    %v52 = vadd.f32 %v50, %v51
    %v53 = vld [vmem:[#allocation7] sm:$0xff]
    %vm54 = vcmp.ge.u32.totalorder %v53, 429496730
    %v55 = vmul.f32 %v52, 1.1111112
    %v56 = vsel %vm54, %v55, 0.0
    %vm57 = vcmask 523264
    %58 = vst.msk [vmem:[#allocation8] sm:$0xff] %vm57, %v56
    // Predicated region
    $region26: #{tpu_custom_call.1} parent=1 // pred_check
      _
    $region27: #{tpu_custom_call.1} parent=1 // pred_check_branch
      %60 = sbr.rel (0) target = $region29
    $region28: #{tpu_custom_call.1} parent=1 // pred_region
      %s62 = ssub.s32 128, 128
      %63 = vsyncadd [#allocation4], %s62
      %s65 = sshll.u32 [#allocation8], 4
      %s66 = int_to_ptr.vmem [resolvable:$true] %s65
      %68 = dma.vmem_to_hbm [thread:$0]  %s66, 128, %s3, [#allocation4]
    $region29: #{tpu_custom_call.1} parent=1 // pred_fallthru
      _
    // Predicated region
    $region30: #{tpu_custom_call.1} parent=1 // pred_check
      _
    $region31: #{tpu_custom_call.1} parent=1 // pred_check_branch
      %70 = sbr.rel (0) target = $region33
    $region32: #{tpu_custom_call.1} parent=1 // pred_region
      %71 = dma.done [#allocation4], 128
    $region33: #{tpu_custom_call.1} parent=1 // pred_fallthru
      _
    %72 = vsyncpa [#allocation3], 1
    %73 = vsyncpa [#allocation6], 1
    %74 = vsyncpa [#allocation4], 1

</llo_original>
